<compile_context>
chip_gen: v7x
topology: tpu7x:2x2x1
jax: 0.10.0
libtpu: 0.0.40
codegen_flags: <defaults>
</compile_context>

<pallas_src>
import functools

import jax
import jax.numpy as jnp
from jax.experimental import pallas as pl
from jax.experimental.pallas import tpu as pltpu

EPS = 1e-5


# --------------------------------- kernel -----------------------------------
def basic_block_kernel(x_ref, w1_ref, w2_ref, bn_ref, out_ref, *, channels, height):
    nh, wc = x_ref.shape                      # (N*H, W*C)
    wdim = wc // channels

    # y position of every row within its image; built once, reused by both
    # convs for the top/bottom zero-padding masks.
    y_ids = jax.lax.broadcasted_iota(jnp.int32, (nh, wc), 0) % height
    top_row = y_ids == 0
    bot_row = y_ids == height - 1

    def conv3x3(act, w_ref):
        # act: (N*H, W*C) f32.  Three accumulating bf16 MXU matmuls, one per
        # kernel row dy; the dx taps + horizontal zero padding live in the
        # banded weight slice w_ref[dy] of shape (W*C, W*C).  Vertical halo =
        # XLU row roll + boundary-row mask (no im2col slab, no zero-row cat).
        mid = act.astype(jnp.bfloat16)
        up = jnp.where(top_row, 0.0, pltpu.roll(act, 1, 0)).astype(jnp.bfloat16)        # in(y-1)
        dn = jnp.where(bot_row, 0.0, pltpu.roll(act, nh - 1, 0)).astype(jnp.bfloat16)   # in(y+1)
        acc = jnp.dot(up, w_ref[0], preferred_element_type=jnp.float32)
        acc = acc + jnp.dot(mid, w_ref[1], preferred_element_type=jnp.float32)
        acc = acc + jnp.dot(dn, w_ref[2], preferred_element_type=jnp.float32)
        return acc                                                   # (N*H, W*C) f32

    def fold_w(row):
        # row: (1, W*C) per-(x, c) column sums -> per-channel sums broadcast
        # back into the channel-tiled lane pattern (stays lane-dense).
        if (wdim & (wdim - 1)) == 0:
            s = channels
            while s < wc:                      # log2(W) XLU lane rolls
                row = row + pltpu.roll(row, s, 1)
                s *= 2
            return row
        r = jnp.sum(row.reshape(wdim, channels), axis=0, keepdims=True)
        return jnp.tile(r, (1, wdim))

    def batchnorm(hx, gamma, beta):
        # Training-mode batch stats (biased variance), all in f32.  One pass
        # for sum & sum-of-squares, one fused multiply-add pass to normalize
        # (gamma folded into scale, mean folded into shift).
        inv_cnt = 1.0 / float(nh * wdim)                 # 1 / (N*H*W)
        mean = fold_w(jnp.sum(hx, axis=0, keepdims=True)) * inv_cnt
        msq = fold_w(jnp.sum(hx * hx, axis=0, keepdims=True)) * inv_cnt
        var = msq - mean * mean
        scale = gamma * jax.lax.rsqrt(var + EPS)         # (1, W*C)
        shift = beta - mean * scale
        return hx * scale + shift

    x = x_ref[...]                                       # (N*H, W*C) f32
    g1, be1 = bn_ref[0:1, :], bn_ref[1:2, :]             # channel-tiled (1, W*C)
    g2, be2 = bn_ref[2:3, :], bn_ref[3:4, :]

    a1 = jnp.maximum(batchnorm(conv3x3(x, w1_ref), g1, be1), 0.0)    # conv1+bn1+relu
    o = batchnorm(conv3x3(a1, w2_ref), g2, be2)                      # conv2+bn2
    out_ref[...] = jnp.maximum(o + x, 0.0).astype(out_ref.dtype)     # +residual, relu


# -------------------------------- wrapper ------------------------------------
def _band_weights(w_hwio, width):
    """(3, 3, Cin, Cout) HWIO conv weight -> (3, W*Cin, W*Cout).  Band dy maps
    the vertically shifted input row in(y+dy-1) (flattened as x*Cin + ci) to
    the output row (flattened as x*Cout + co); the dx taps and the left/right
    zero padding live in the band structure."""
    kh, kw, cin, cout = w_hwio.shape
    xi = jnp.arange(width)[:, None]                 # input column
    xo = jnp.arange(width)[None, :]                 # output column
    dx = xi - xo + 1                                # kernel column feeding xi -> xo
    valid = (dx >= 0) & (dx < kw)
    taps = w_hwio[:, jnp.clip(dx, 0, kw - 1)]                     # (3, W, W, Ci, Co)
    taps = jnp.where(valid[None, :, :, None, None], taps, 0.0)
    b = jnp.transpose(taps, (0, 1, 3, 2, 4))                      # (3, W, Ci, W, Co)
    return b.reshape(kh, width * cin, width * cout)


def basic_block(x_nchw, w1, w2, g1, b1, g2, b2):
    """x_nchw: (N, C, H, W) f32. w1/w2: (3, 3, Cin, Cout) HWIO. Returns NCHW."""
    N, C, H, W = x_nchw.shape
    WC = W * C
    NH = N * H

    # Lane-dense slab: NCHW -> NHWC -> (N*H, W*C).  No padding needed.
    x_slab = jnp.transpose(x_nchw, (0, 2, 3, 1)).reshape(NH, WC)
    w1b = _band_weights(w1, W).astype(jnp.bfloat16)               # (3, WC, WC)
    w2b = _band_weights(w2, W).astype(jnp.bfloat16)
    # BN affine params pre-tiled into the (x*C + c) lane pattern: (4, W*C).
    bn = jnp.stack([jnp.tile(g1, W), jnp.tile(b1, W),
                    jnp.tile(g2, W), jnp.tile(b2, W)]).astype(jnp.float32)

    grid_spec = pltpu.PrefetchScalarGridSpec(
        num_scalar_prefetch=0,
        grid=(1,),
        in_specs=[
            pl.BlockSpec((NH, WC), lambda i: (0, 0)),
            pl.BlockSpec((3, WC, WC), lambda i: (0, 0, 0)),
            pl.BlockSpec((3, WC, WC), lambda i: (0, 0, 0)),
            pl.BlockSpec((4, WC), lambda i: (0, 0)),
        ],
        out_specs=pl.BlockSpec((NH, WC), lambda i: (0, 0)),
    )

    out2d = pl.pallas_call(
        functools.partial(basic_block_kernel, channels=C, height=H),
        out_shape=jax.ShapeDtypeStruct((NH, WC), jnp.float32),
        grid_spec=grid_spec,
        compiler_params=pltpu.CompilerParams(
            dimension_semantics=("arbitrary",),
            vmem_limit_bytes=32 * 1024 * 1024),
    )(x_slab, w1b, w2b, bn)

    return jnp.transpose(out2d.reshape(N, H, W, C), (0, 3, 1, 2))   # -> NCHW


# ----------------------------- pure-JAX reference -----------------------------
def _conv3x3_ref(x_nhwc, w_hwio):
    return jax.lax.conv_general_dilated(
        x_nhwc, w_hwio, window_strides=(1, 1), padding=((1, 1), (1, 1)),
        dimension_numbers=("NHWC", "HWIO", "NHWC"),
        precision=jax.lax.Precision.HIGHEST)


def _bn_train_ref(x, g, b):
    m = jnp.mean(x, axis=(0, 1, 2), keepdims=True)
    v = jnp.mean((x - m) ** 2, axis=(0, 1, 2), keepdims=True)
    return (x - m) / jnp.sqrt(v + EPS) * g.reshape(1, 1, 1, -1) + b.reshape(1, 1, 1, -1)


def basic_block_ref(x_nchw, w1, w2, g1, b1, g2, b2):
    x = jnp.transpose(x_nchw, (0, 2, 3, 1))
    h = jnp.maximum(_bn_train_ref(_conv3x3_ref(x, w1), g1, b1), 0.0)
    h = _bn_train_ref(_conv3x3_ref(h, w2), g2, b2)
    o = jnp.maximum(h + x, 0.0)
    return jnp.transpose(o, (0, 3, 1, 2))


if __name__ == "__main__":
    # BasicBlock(inplanes=8, planes=8, stride=1); W*C = 128 -> lane-dense slabs.
    N, C, H, W = 2, 8, 16, 16
    key = jax.random.PRNGKey(0)
    kx, k1, k2, kg1, kb1, kg2, kb2 = jax.random.split(key, 7)

    x = jax.random.normal(kx, (N, C, H, W), jnp.float32)
    # conv weights in HWIO (equivalent to torch (Cout, Cin, 3, 3) transposed).
    w1 = jax.random.normal(k1, (3, 3, C, C), jnp.float32) * 0.1
    w2 = jax.random.normal(k2, (3, 3, C, C), jnp.float32) * 0.1
    g1 = 1.0 + 0.1 * jax.random.normal(kg1, (C,), jnp.float32)
    b1 = 0.1 * jax.random.normal(kb1, (C,), jnp.float32)
    g2 = 1.0 + 0.1 * jax.random.normal(kg2, (C,), jnp.float32)
    b2 = 0.1 * jax.random.normal(kb2, (C,), jnp.float32)

    out = jax.block_until_ready(basic_block(x, w1, w2, g1, b1, g2, b2))
    ref = jax.block_until_ready(basic_block_ref(x, w1, w2, g1, b1, g2, b2))

    assert out.shape == (N, C, H, W)
    # Deliberate precision change: kernel matmuls use bf16 MXU inputs (f32
    # accumulate); reference uses f32 HIGHEST.  Tolerance reflects that.
    err = float(jnp.abs(out - ref).max())
    assert jnp.allclose(out, ref, atol=3e-2, rtol=3e-2), err
    print("KERNEL_OK")
</pallas_src>

<mosaic_0001>
module attributes {stable_mosaic.version = 11 : i64} {
  func.func @basic_block_kernel(%arg0: i32, %arg1: memref<32x128xf32, #tpu.memory_space<vmem>>, %arg2: memref<3x128x128xbf16, #tpu.memory_space<vmem>>, %arg3: memref<3x128x128xbf16, #tpu.memory_space<vmem>>, %arg4: memref<4x128xf32, #tpu.memory_space<vmem>>, %arg5: memref<32x128xf32, #tpu.memory_space<vmem>>) attributes {dimension_semantics = [#tpu.dimension_semantics<arbitrary>], iteration_bounds = array<i64: 1>, scalar_prefetch = 0 : i64, scratch_operands = 0 : i64, tpu.core_type = #tpu.core_type<tc>, window_params = [{pipeline_mode = #tpu.pipeline_mode<synchronous>, transform_indices = @transform_0, window_bounds = array<i64: 32, 128>}, {pipeline_mode = #tpu.pipeline_mode<synchronous>, transform_indices = @transform_1, window_bounds = array<i64: 3, 128, 128>}, {pipeline_mode = #tpu.pipeline_mode<synchronous>, transform_indices = @transform_2, window_bounds = array<i64: 3, 128, 128>}, {pipeline_mode = #tpu.pipeline_mode<synchronous>, transform_indices = @transform_3, window_bounds = array<i64: 4, 128>}, {pipeline_mode = #tpu.pipeline_mode<synchronous>, transform_indices = @transform_4, window_bounds = array<i64: 32, 128>}]} {
    %0 = tpu.iota {dimensions = array<i32: 0>} : vector<32x128xi32>
    %c16_i32 = arith.constant 16 : i32
    %c0_i32 = arith.constant 0 : i32
    %1 = arith.cmpi eq, %c16_i32, %c0_i32 : i32
    %c1_i32 = arith.constant 1 : i32
    %2 = arith.select %1, %c1_i32, %c16_i32 : i32
    %3 = vector.broadcast %2 : i32 to vector<32x128xi32>
    %4 = arith.remsi %0, %3 : vector<32x128xi32>
    %c0_i32_0 = arith.constant 0 : i32
    %5 = vector.broadcast %c0_i32_0 : i32 to vector<32x128xi32>
    %6 = arith.cmpi ne, %4, %5 : vector<32x128xi32>
    %c0_i32_1 = arith.constant 0 : i32
    %7 = vector.broadcast %c0_i32_1 : i32 to vector<32x128xi32>
    %8 = arith.cmpi slt, %4, %7 : vector<32x128xi32>
    %c0_i32_2 = arith.constant 0 : i32
    %9 = arith.cmpi slt, %2, %c0_i32_2 : i32
    %10 = vector.broadcast %9 : i1 to vector<32x128xi1>
    %11 = vector.broadcast %10 : vector<32x128xi1> to vector<32x128xi1>
    %12 = arith.xori %8, %11 : vector<32x128xi1>
    %13 = arith.andi %12, %6 : vector<32x128xi1>
    %14 = vector.broadcast %2 : i32 to vector<32x128xi32>
    %15 = arith.addi %4, %14 : vector<32x128xi32>
    %16 = arith.select %13, %15, %4 : vector<32x128xi1>, vector<32x128xi32>
    %c0_i32_3 = arith.constant 0 : i32
    %17 = vector.broadcast %c0_i32_3 : i32 to vector<32x128xi32>
    %18 = arith.cmpi eq, %16, %17 : vector<32x128xi32>
    %c15_i32 = arith.constant 15 : i32
    %19 = vector.broadcast %c15_i32 : i32 to vector<32x128xi32>
    %20 = arith.cmpi eq, %16, %19 : vector<32x128xi32>
    %c0 = arith.constant 0 : index
    %c0_4 = arith.constant 0 : index
    %21 = vector.load %arg1[%c0, %c0_4] : memref<32x128xf32, #tpu.memory_space<vmem>>, vector<32x128xf32>
    %c0_5 = arith.constant 0 : index
    %c0_6 = arith.constant 0 : index
    %22 = vector.load %arg4[%c0_5, %c0_6] : memref<4x128xf32, #tpu.memory_space<vmem>>, vector<1x128xf32>
    %c1 = arith.constant 1 : index
    %c0_7 = arith.constant 0 : index
    %23 = vector.load %arg4[%c1, %c0_7] : memref<4x128xf32, #tpu.memory_space<vmem>>, vector<1x128xf32>
    %c2 = arith.constant 2 : index
    %c0_8 = arith.constant 0 : index
    %24 = vector.load %arg4[%c2, %c0_8] : memref<4x128xf32, #tpu.memory_space<vmem>>, vector<1x128xf32>
    %c3 = arith.constant 3 : index
    %c0_9 = arith.constant 0 : index
    %25 = vector.load %arg4[%c3, %c0_9] : memref<4x128xf32, #tpu.memory_space<vmem>>, vector<1x128xf32>
    %26 = arith.truncf %21 : vector<32x128xf32> to vector<32x128xbf16>
    %c1_i32_10 = arith.constant 1 : i32
    %27 = tpu.dynamic_rotate %21 by %c1_i32_10 dim 0 : vector<32x128xf32>, i32 -> vector<32x128xf32>
    %cst = arith.constant 0.000000e+00 : f32
    %28 = vector.broadcast %cst : f32 to vector<32x128xf32>
    %29 = arith.select %18, %28, %27 : vector<32x128xi1>, vector<32x128xf32>
    %30 = arith.truncf %29 : vector<32x128xf32> to vector<32x128xbf16>
    %c31_i32 = arith.constant 31 : i32
    %31 = tpu.dynamic_rotate %21 by %c31_i32 dim 0 : vector<32x128xf32>, i32 -> vector<32x128xf32>
    %cst_11 = arith.constant 0.000000e+00 : f32
    %32 = vector.broadcast %cst_11 : f32 to vector<32x128xf32>
    %33 = arith.select %20, %32, %31 : vector<32x128xi1>, vector<32x128xf32>
    %34 = arith.truncf %33 : vector<32x128xf32> to vector<32x128xbf16>
    %c0_12 = arith.constant 0 : index
    %c0_13 = arith.constant 0 : index
    %c0_14 = arith.constant 0 : index
    %35 = vector.load %arg2[%c0_12, %c0_13, %c0_14] : memref<3x128x128xbf16, #tpu.memory_space<vmem>>, vector<1x128x128xbf16>
    %36 = vector.shape_cast %35 : vector<1x128x128xbf16> to vector<128x128xbf16>
    %cst_15 = arith.constant dense<0.000000e+00> : vector<32x128xf32>
    %37 = tpu.matmul %30, %36, %cst_15 {dimension_numbers = #tpu.dot_dimension_numbers<[1], [0], [0], [1], [0, 0, 1, 1], [], []>} : vector<32x128xbf16>, vector<128x128xbf16>, vector<32x128xf32> -> vector<32x128xf32>
    %c1_16 = arith.constant 1 : index
    %c0_17 = arith.constant 0 : index
    %c0_18 = arith.constant 0 : index
    %38 = vector.load %arg2[%c1_16, %c0_17, %c0_18] : memref<3x128x128xbf16, #tpu.memory_space<vmem>>, vector<1x128x128xbf16>
    %39 = vector.shape_cast %38 : vector<1x128x128xbf16> to vector<128x128xbf16>
    %cst_19 = arith.constant dense<0.000000e+00> : vector<32x128xf32>
    %40 = tpu.matmul %26, %39, %cst_19 {dimension_numbers = #tpu.dot_dimension_numbers<[1], [0], [0], [1], [0, 0, 1, 1], [], []>} : vector<32x128xbf16>, vector<128x128xbf16>, vector<32x128xf32> -> vector<32x128xf32>
    %41 = arith.addf %37, %40 : vector<32x128xf32>
    %c2_20 = arith.constant 2 : index
    %c0_21 = arith.constant 0 : index
    %c0_22 = arith.constant 0 : index
    %42 = vector.load %arg2[%c2_20, %c0_21, %c0_22] : memref<3x128x128xbf16, #tpu.memory_space<vmem>>, vector<1x128x128xbf16>
    %43 = vector.shape_cast %42 : vector<1x128x128xbf16> to vector<128x128xbf16>
    %cst_23 = arith.constant dense<0.000000e+00> : vector<32x128xf32>
    %44 = tpu.matmul %34, %43, %cst_23 {dimension_numbers = #tpu.dot_dimension_numbers<[1], [0], [0], [1], [0, 0, 1, 1], [], []>} : vector<32x128xbf16>, vector<128x128xbf16>, vector<32x128xf32> -> vector<32x128xf32>
    %45 = arith.addf %41, %44 : vector<32x128xf32>
    %cst_24 = arith.constant dense<0.000000e+00> : vector<128xf32>
    %46 = vector.multi_reduction <add>, %45, %cst_24 [0] : vector<32x128xf32> to vector<128xf32>
    %47 = vector.shape_cast %46 : vector<128xf32> to vector<1x128xf32>
    %c8_i32 = arith.constant 8 : i32
    %48 = tpu.dynamic_rotate %47 by %c8_i32 dim 1 : vector<1x128xf32>, i32 -> vector<1x128xf32>
    %49 = arith.addf %47, %48 : vector<1x128xf32>
    %c16_i32_25 = arith.constant 16 : i32
    %50 = tpu.dynamic_rotate %49 by %c16_i32_25 dim 1 : vector<1x128xf32>, i32 -> vector<1x128xf32>
    %51 = arith.addf %49, %50 : vector<1x128xf32>
    %c32_i32 = arith.constant 32 : i32
    %52 = tpu.dynamic_rotate %51 by %c32_i32 dim 1 : vector<1x128xf32>, i32 -> vector<1x128xf32>
    %53 = arith.addf %51, %52 : vector<1x128xf32>
    %c64_i32 = arith.constant 64 : i32
    %54 = tpu.dynamic_rotate %53 by %c64_i32 dim 1 : vector<1x128xf32>, i32 -> vector<1x128xf32>
    %55 = arith.addf %53, %54 : vector<1x128xf32>
    %cst_26 = arith.constant 0.001953125 : f32
    %56 = vector.broadcast %cst_26 : f32 to vector<1x128xf32>
    %57 = arith.mulf %55, %56 : vector<1x128xf32>
    %58 = arith.mulf %45, %45 : vector<32x128xf32>
    %cst_27 = arith.constant dense<0.000000e+00> : vector<128xf32>
    %59 = vector.multi_reduction <add>, %58, %cst_27 [0] : vector<32x128xf32> to vector<128xf32>
    %60 = vector.shape_cast %59 : vector<128xf32> to vector<1x128xf32>
    %c8_i32_28 = arith.constant 8 : i32
    %61 = tpu.dynamic_rotate %60 by %c8_i32_28 dim 1 : vector<1x128xf32>, i32 -> vector<1x128xf32>
    %62 = arith.addf %60, %61 : vector<1x128xf32>
    %c16_i32_29 = arith.constant 16 : i32
    %63 = tpu.dynamic_rotate %62 by %c16_i32_29 dim 1 : vector<1x128xf32>, i32 -> vector<1x128xf32>
    %64 = arith.addf %62, %63 : vector<1x128xf32>
    %c32_i32_30 = arith.constant 32 : i32
    %65 = tpu.dynamic_rotate %64 by %c32_i32_30 dim 1 : vector<1x128xf32>, i32 -> vector<1x128xf32>
    %66 = arith.addf %64, %65 : vector<1x128xf32>
    %c64_i32_31 = arith.constant 64 : i32
    %67 = tpu.dynamic_rotate %66 by %c64_i32_31 dim 1 : vector<1x128xf32>, i32 -> vector<1x128xf32>
    %68 = arith.addf %66, %67 : vector<1x128xf32>
    %cst_32 = arith.constant 0.001953125 : f32
    %69 = vector.broadcast %cst_32 : f32 to vector<1x128xf32>
    %70 = arith.mulf %68, %69 : vector<1x128xf32>
    %71 = arith.mulf %57, %57 : vector<1x128xf32>
    %72 = arith.subf %70, %71 : vector<1x128xf32>
    %cst_33 = arith.constant 9.99999974E-6 : f32
    %73 = vector.broadcast %cst_33 : f32 to vector<1x128xf32>
    %74 = arith.addf %72, %73 : vector<1x128xf32>
    %75 = math.rsqrt %74 : vector<1x128xf32>
    %76 = arith.mulf %22, %75 : vector<1x128xf32>
    %77 = arith.mulf %57, %76 : vector<1x128xf32>
    %78 = arith.subf %23, %77 : vector<1x128xf32>
    %79 = vector.broadcast %76 : vector<1x128xf32> to vector<32x128xf32>
    %80 = arith.mulf %45, %79 : vector<32x128xf32>
    %81 = vector.broadcast %78 : vector<1x128xf32> to vector<32x128xf32>
    %82 = arith.addf %80, %81 : vector<32x128xf32>
    %cst_34 = arith.constant 0.000000e+00 : f32
    %83 = vector.broadcast %cst_34 : f32 to vector<32x128xf32>
    %84 = arith.maximumf %82, %83 : vector<32x128xf32>
    %85 = arith.truncf %84 : vector<32x128xf32> to vector<32x128xbf16>
    %c1_i32_35 = arith.constant 1 : i32
    %86 = tpu.dynamic_rotate %84 by %c1_i32_35 dim 0 : vector<32x128xf32>, i32 -> vector<32x128xf32>
    %cst_36 = arith.constant 0.000000e+00 : f32
    %87 = vector.broadcast %cst_36 : f32 to vector<32x128xf32>
    %88 = arith.select %18, %87, %86 : vector<32x128xi1>, vector<32x128xf32>
    %89 = arith.truncf %88 : vector<32x128xf32> to vector<32x128xbf16>
    %c31_i32_37 = arith.constant 31 : i32
    %90 = tpu.dynamic_rotate %84 by %c31_i32_37 dim 0 : vector<32x128xf32>, i32 -> vector<32x128xf32>
    %cst_38 = arith.constant 0.000000e+00 : f32
    %91 = vector.broadcast %cst_38 : f32 to vector<32x128xf32>
    %92 = arith.select %20, %91, %90 : vector<32x128xi1>, vector<32x128xf32>
    %93 = arith.truncf %92 : vector<32x128xf32> to vector<32x128xbf16>
    %c0_39 = arith.constant 0 : index
    %c0_40 = arith.constant 0 : index
    %c0_41 = arith.constant 0 : index
    %94 = vector.load %arg3[%c0_39, %c0_40, %c0_41] : memref<3x128x128xbf16, #tpu.memory_space<vmem>>, vector<1x128x128xbf16>
    %95 = vector.shape_cast %94 : vector<1x128x128xbf16> to vector<128x128xbf16>
    %cst_42 = arith.constant dense<0.000000e+00> : vector<32x128xf32>
    %96 = tpu.matmul %89, %95, %cst_42 {dimension_numbers = #tpu.dot_dimension_numbers<[1], [0], [0], [1], [0, 0, 1, 1], [], []>} : vector<32x128xbf16>, vector<128x128xbf16>, vector<32x128xf32> -> vector<32x128xf32>
    %c1_43 = arith.constant 1 : index
    %c0_44 = arith.constant 0 : index
    %c0_45 = arith.constant 0 : index
    %97 = vector.load %arg3[%c1_43, %c0_44, %c0_45] : memref<3x128x128xbf16, #tpu.memory_space<vmem>>, vector<1x128x128xbf16>
    %98 = vector.shape_cast %97 : vector<1x128x128xbf16> to vector<128x128xbf16>
    %cst_46 = arith.constant dense<0.000000e+00> : vector<32x128xf32>
    %99 = tpu.matmul %85, %98, %cst_46 {dimension_numbers = #tpu.dot_dimension_numbers<[1], [0], [0], [1], [0, 0, 1, 1], [], []>} : vector<32x128xbf16>, vector<128x128xbf16>, vector<32x128xf32> -> vector<32x128xf32>
    %100 = arith.addf %96, %99 : vector<32x128xf32>
    %c2_47 = arith.constant 2 : index
    %c0_48 = arith.constant 0 : index
    %c0_49 = arith.constant 0 : index
    %101 = vector.load %arg3[%c2_47, %c0_48, %c0_49] : memref<3x128x128xbf16, #tpu.memory_space<vmem>>, vector<1x128x128xbf16>
    %102 = vector.shape_cast %101 : vector<1x128x128xbf16> to vector<128x128xbf16>
    %cst_50 = arith.constant dense<0.000000e+00> : vector<32x128xf32>
    %103 = tpu.matmul %93, %102, %cst_50 {dimension_numbers = #tpu.dot_dimension_numbers<[1], [0], [0], [1], [0, 0, 1, 1], [], []>} : vector<32x128xbf16>, vector<128x128xbf16>, vector<32x128xf32> -> vector<32x128xf32>
    %104 = arith.addf %100, %103 : vector<32x128xf32>
    %cst_51 = arith.constant dense<0.000000e+00> : vector<128xf32>
    %105 = vector.multi_reduction <add>, %104, %cst_51 [0] : vector<32x128xf32> to vector<128xf32>
    %106 = vector.shape_cast %105 : vector<128xf32> to vector<1x128xf32>
    %c8_i32_52 = arith.constant 8 : i32
    %107 = tpu.dynamic_rotate %106 by %c8_i32_52 dim 1 : vector<1x128xf32>, i32 -> vector<1x128xf32>
    %108 = arith.addf %106, %107 : vector<1x128xf32>
    %c16_i32_53 = arith.constant 16 : i32
    %109 = tpu.dynamic_rotate %108 by %c16_i32_53 dim 1 : vector<1x128xf32>, i32 -> vector<1x128xf32>
    %110 = arith.addf %108, %109 : vector<1x128xf32>
    %c32_i32_54 = arith.constant 32 : i32
    %111 = tpu.dynamic_rotate %110 by %c32_i32_54 dim 1 : vector<1x128xf32>, i32 -> vector<1x128xf32>
    %112 = arith.addf %110, %111 : vector<1x128xf32>
    %c64_i32_55 = arith.constant 64 : i32
    %113 = tpu.dynamic_rotate %112 by %c64_i32_55 dim 1 : vector<1x128xf32>, i32 -> vector<1x128xf32>
    %114 = arith.addf %112, %113 : vector<1x128xf32>
    %cst_56 = arith.constant 0.001953125 : f32
    %115 = vector.broadcast %cst_56 : f32 to vector<1x128xf32>
    %116 = arith.mulf %114, %115 : vector<1x128xf32>
    %117 = arith.mulf %104, %104 : vector<32x128xf32>
    %cst_57 = arith.constant dense<0.000000e+00> : vector<128xf32>
    %118 = vector.multi_reduction <add>, %117, %cst_57 [0] : vector<32x128xf32> to vector<128xf32>
    %119 = vector.shape_cast %118 : vector<128xf32> to vector<1x128xf32>
    %c8_i32_58 = arith.constant 8 : i32
    %120 = tpu.dynamic_rotate %119 by %c8_i32_58 dim 1 : vector<1x128xf32>, i32 -> vector<1x128xf32>
    %121 = arith.addf %119, %120 : vector<1x128xf32>
    %c16_i32_59 = arith.constant 16 : i32
    %122 = tpu.dynamic_rotate %121 by %c16_i32_59 dim 1 : vector<1x128xf32>, i32 -> vector<1x128xf32>
    %123 = arith.addf %121, %122 : vector<1x128xf32>
    %c32_i32_60 = arith.constant 32 : i32
    %124 = tpu.dynamic_rotate %123 by %c32_i32_60 dim 1 : vector<1x128xf32>, i32 -> vector<1x128xf32>
    %125 = arith.addf %123, %124 : vector<1x128xf32>
    %c64_i32_61 = arith.constant 64 : i32
    %126 = tpu.dynamic_rotate %125 by %c64_i32_61 dim 1 : vector<1x128xf32>, i32 -> vector<1x128xf32>
    %127 = arith.addf %125, %126 : vector<1x128xf32>
    %cst_62 = arith.constant 0.001953125 : f32
    %128 = vector.broadcast %cst_62 : f32 to vector<1x128xf32>
    %129 = arith.mulf %127, %128 : vector<1x128xf32>
    %130 = arith.mulf %116, %116 : vector<1x128xf32>
    %131 = arith.subf %129, %130 : vector<1x128xf32>
    %cst_63 = arith.constant 9.99999974E-6 : f32
    %132 = vector.broadcast %cst_63 : f32 to vector<1x128xf32>
    %133 = arith.addf %131, %132 : vector<1x128xf32>
    %134 = math.rsqrt %133 : vector<1x128xf32>
    %135 = arith.mulf %24, %134 : vector<1x128xf32>
    %136 = arith.mulf %116, %135 : vector<1x128xf32>
    %137 = arith.subf %25, %136 : vector<1x128xf32>
    %138 = vector.broadcast %135 : vector<1x128xf32> to vector<32x128xf32>
    %139 = arith.mulf %104, %138 : vector<32x128xf32>
    %140 = vector.broadcast %137 : vector<1x128xf32> to vector<32x128xf32>
    %141 = arith.addf %139, %140 : vector<32x128xf32>
    %142 = arith.addf %141, %21 : vector<32x128xf32>
    %cst_64 = arith.constant 0.000000e+00 : f32
    %143 = vector.broadcast %cst_64 : f32 to vector<32x128xf32>
    %144 = arith.maximumf %142, %143 : vector<32x128xf32>
    %c0_65 = arith.constant 0 : index
    %c0_66 = arith.constant 0 : index
    %145 = vector.load %arg5[%c0_65, %c0_66] : memref<32x128xf32, #tpu.memory_space<vmem>>, vector<32x128xf32>
    tpu.vector_store %arg5[%c0_65, %c0_66], %144 {strides = array<i32>} : memref<32x128xf32, #tpu.memory_space<vmem>>, vector<32x128xf32>,
    return
  }
  func.func @transform_0(%arg0: i32) -> (i32, i32) {
    %c0_i32 = arith.constant 0 : i32
    %c0_i32_0 = arith.constant 0 : i32
    %c0_i32_1 = arith.constant 0 : i32
    return %c0_i32, %c0_i32_0 : i32, i32
  }
  func.func @transform_1(%arg0: i32) -> (i32, i32, i32) {
    %c0_i32 = arith.constant 0 : i32
    %c0_i32_0 = arith.constant 0 : i32
    %c0_i32_1 = arith.constant 0 : i32
    %c0_i32_2 = arith.constant 0 : i32
    return %c0_i32, %c0_i32_0, %c0_i32_1 : i32, i32, i32
  }
  func.func @transform_2(%arg0: i32) -> (i32, i32, i32) {
    %c0_i32 = arith.constant 0 : i32
    %c0_i32_0 = arith.constant 0 : i32
    %c0_i32_1 = arith.constant 0 : i32
    %c0_i32_2 = arith.constant 0 : i32
    return %c0_i32, %c0_i32_0, %c0_i32_1 : i32, i32, i32
  }
  func.func @transform_3(%arg0: i32) -> (i32, i32) {
    %c0_i32 = arith.constant 0 : i32
    %c0_i32_0 = arith.constant 0 : i32
    %c0_i32_1 = arith.constant 0 : i32
    return %c0_i32, %c0_i32_0 : i32, i32
  }
  func.func @transform_4(%arg0: i32) -> (i32, i32) {
    %c0_i32 = arith.constant 0 : i32
    %c0_i32_0 = arith.constant 0 : i32
    %c0_i32_1 = arith.constant 0 : i32
    return %c0_i32, %c0_i32_0 : i32, i32
  }
}

</mosaic_0001>

<llo_original>
// kernel: tpu_custom_call.1
$region0: #{tpu_custom_call.1}
  #allocation0 [shape = 'u32[]', space=smem, size = 0x4, offset = 0x4, fixed_abs, tag = 'smem constant byte address 0x4 - core index']
  #allocation1 [shape = 'u32[144,128]{1,0:T(1,128)}', space=vmem, size = 0x12000, scoped, tag = 'internal scratch']
  %s0 = inlined_call_operand.hbm [shape: f32[32,128], index: 0, kind: input, shape index: {}]
  %s1 = inlined_call_operand.hbm [shape: bf16[3,128,128], index: 1, kind: input, shape index: {}]
  %s2 = inlined_call_operand.hbm [shape: bf16[3,128,128], index: 2, kind: input, shape index: {}]
  %s3 = inlined_call_operand.vmem [shape: f32[4,128], index: 3, kind: input, shape index: {}]
  %s4 = inlined_call_operand.hbm [shape: f32[32,128], index: 4, kind: output, shape index: {}]
  %s5 = sld [smem:[#allocation0]]
  $region38: #{tpu_custom_call.1} parent=0
    _
  %s7 = ssub.s32 1, %s5
  %s8 = scalar_select 0, %s7, %s5
  $region1: #{tpu_custom_call.1} parent=0
    #allocation2 [shape = 'u8[16384]{0}', space=vmem, size = 0x4000, scoped, tag = 'input window, operand 0, single buffered']
    #allocation3 [shape = 's32[1]{0}', space=sflag, size = 0x4, scoped, tag = 'scoped memory for tpu_custom_call.1']
    #allocation4 [shape = 's32[1]{0}', space=sflag, size = 0x4, scoped, tag = 'scoped memory for tpu_custom_call.1']
    #allocation5 [shape = 'u8[98304]{0}', space=vmem, size = 0x18000, scoped, tag = 'input window, operand 1, single buffered']
    #allocation6 [shape = 's32[1]{0}', space=sflag, size = 0x4, scoped, tag = 'scoped memory for tpu_custom_call.1']
    #allocation7 [shape = 'u8[98304]{0}', space=vmem, size = 0x18000, scoped, tag = 'input window, operand 2, single buffered']
    #allocation8 [shape = 'u8[16384]{0}', space=vmem, size = 0x4000, scoped, tag = 'output window, operand 0, single buffered']
    %9 = vsyncpa [#allocation3], 0
    %10 = vsyncpa [#allocation6], 0
    %11 = vsyncpa [#allocation4], 0
    // Predicated region
    $region2: #{tpu_custom_call.1} parent=1 // pred_check
      _
    $region3: #{tpu_custom_call.1} parent=1 // pred_check_branch
      %13 = sbr.rel (0) target = $region5
    $region4: #{tpu_custom_call.1} parent=1 // pred_region
      %s15 = ssub.s32 512, 512
      %16 = vsyncadd [#allocation3], %s15
      %s17 = sshll.u32 [#allocation2], 4
      %s18 = int_to_ptr.vmem [resolvable:$true] %s17
      %23 = dma.hbm_to_vmem [thread:$0]  %s0, 512, %s18, [#allocation3], 128, 128, 8
    $region5: #{tpu_custom_call.1} parent=1 // pred_fallthru
      _
    // Predicated region
    $region6: #{tpu_custom_call.1} parent=1 // pred_check
      _
    $region7: #{tpu_custom_call.1} parent=1 // pred_check_branch
      %25 = sbr.rel (0) target = $region9
    $region8: #{tpu_custom_call.1} parent=1 // pred_region
      %s27 = ssub.s32 3072, 3072
      %28 = vsyncadd [#allocation6], %s27
      %s29 = sshll.u32 [#allocation5], 4
      %s30 = int_to_ptr.vmem [resolvable:$true] %s29
      %35 = dma.hbm_to_vmem [thread:$0]  %s1, 3072, %s30, [#allocation6], 64, 64, 4
    $region9: #{tpu_custom_call.1} parent=1 // pred_fallthru
      _
    // Predicated region
    $region10: #{tpu_custom_call.1} parent=1 // pred_check
      _
    $region11: #{tpu_custom_call.1} parent=1 // pred_check_branch
      %37 = sbr.rel (0) target = $region13
    $region12: #{tpu_custom_call.1} parent=1 // pred_region
      %s39 = ssub.s32 3072, 3072
      %40 = vsyncadd [#allocation6], %s39
      %s41 = sshll.u32 [#allocation7], 4
      %s42 = int_to_ptr.vmem [resolvable:$true] %s41
      %47 = dma.hbm_to_vmem [thread:$0]  %s2, 3072, %s42, [#allocation6], 64, 64, 4
    $region13: #{tpu_custom_call.1} parent=1 // pred_fallthru
      _
    // Predicated region
    $region14: #{tpu_custom_call.1} parent=1 // pred_check
      _
    $region15: #{tpu_custom_call.1} parent=1 // pred_check_branch
      %49 = sbr.rel (0) target = $region17
    $region16: #{tpu_custom_call.1} parent=1 // pred_region
      _
    $region17: #{tpu_custom_call.1} parent=1 // pred_fallthru
      _
    // Predicated region
    $region18: #{tpu_custom_call.1} parent=1 // pred_check
      _
    $region19: #{tpu_custom_call.1} parent=1 // pred_check_branch
      %51 = sbr.rel (0) target = $region21
    $region20: #{tpu_custom_call.1} parent=1 // pred_region
      %52 = dma.done [#allocation3], 512
    $region21: #{tpu_custom_call.1} parent=1 // pred_fallthru
      _
    // Predicated region
    $region22: #{tpu_custom_call.1} parent=1 // pred_check
      _
    $region23: #{tpu_custom_call.1} parent=1 // pred_check_branch
      %54 = sbr.rel (0) target = $region25
    $region24: #{tpu_custom_call.1} parent=1 // pred_region
      %55 = dma.done [#allocation6], 3072
    $region25: #{tpu_custom_call.1} parent=1 // pred_fallthru
      _
    // Predicated region
    $region26: #{tpu_custom_call.1} parent=1 // pred_check
      _
    $region27: #{tpu_custom_call.1} parent=1 // pred_check_branch
      %57 = sbr.rel (0) target = $region29
    $region28: #{tpu_custom_call.1} parent=1 // pred_region
      %58 = dma.done [#allocation6], 3072
    $region29: #{tpu_custom_call.1} parent=1 // pred_fallthru
      _
    %v60 = vlaneseq
    %v61 = vshrl.u32 %v60, 7
    %v62 = vadd.s32 %v61, 8
    %v63 = vadd.s32 %v61, 16
    %v64 = vadd.s32 %v61, 24
    %vm65 = vcmp.lt.s32.totalorder %v61, 0
    %v66 = vsub.s32 0, %v61
    %v67 = vsel %vm65, %v66, %v61
    %v68 = vshrl.u32 %v67, 4
    %v69 = vand.u32 %v67, 15
    %v70 = vsub.s32 0, %v69
    %v71 = vsel %vm65, %v70, %v69
    %vm72 = vcmp.lt.s32.totalorder %v62, 0
    %v73 = vsub.s32 0, %v62
    %v74 = vsel %vm72, %v73, %v62
    %v75 = vshrl.u32 %v74, 4
    %v76 = vand.u32 %v74, 15
    %v77 = vsub.s32 0, %v76
    %v78 = vsel %vm72, %v77, %v76
    %vm79 = vcmp.lt.s32.totalorder %v63, 0
    %v80 = vsub.s32 0, %v63
    %v81 = vsel %vm79, %v80, %v63
    %v82 = vshrl.u32 %v81, 4
    %v83 = vand.u32 %v81, 15
    %v84 = vsub.s32 0, %v83
    %v85 = vsel %vm79, %v84, %v83
    %vm86 = vcmp.lt.s32.totalorder %v64, 0
    %v87 = vsub.s32 0, %v64
    %v88 = vsel %vm86, %v87, %v64
    %v89 = vshrl.u32 %v88, 4
    %v90 = vand.u32 %v88, 15
    %v91 = vsub.s32 0, %v90
    %v92 = vsel %vm86, %v91, %v90
    %vm93 = vcmp.ne.s32.totalorder %v71, 0
    %vm94 = vcmp.ne.s32.totalorder %v78, 0
    %vm95 = vcmp.ne.s32.totalorder %v85, 0
    %vm96 = vcmp.ne.s32.totalorder %v92, 0
    %vm97 = vcmp.lt.s32.totalorder %v71, 0
    %vm98 = vcmp.lt.s32.totalorder %v78, 0
    %vm99 = vcmp.lt.s32.totalorder %v85, 0
    %vm100 = vcmp.lt.s32.totalorder %v92, 0
    %vm101 = vmand %vm97, %vm93
    %vm102 = vmand %vm98, %vm94
    %vm103 = vmand %vm99, %vm95
    %vm104 = vmand %vm100, %vm96
    %v105 = vadd.s32 %v71, 16
    %v106 = vadd.s32 %v78, 16
    %v107 = vadd.s32 %v85, 16
    %v108 = vadd.s32 %v92, 16
    %v109 = vsel %vm101, %v105, %v71
    %v110 = vsel %vm102, %v106, %v78
    %v111 = vsel %vm103, %v107, %v85
    %v112 = vsel %vm104, %v108, %v92
    %vm113 = vcmp.eq.s32.totalorder %v109, 0
    %vm114 = vcmp.eq.s32.totalorder %v110, 0
    %vm115 = vcmp.eq.s32.totalorder %v111, 0
    %vm116 = vcmp.eq.s32.totalorder %v112, 0
    %vm117 = vcmp.eq.s32.totalorder %v109, 15
    %vm118 = vcmp.eq.s32.totalorder %v110, 15
    %vm119 = vcmp.eq.s32.totalorder %v111, 15
    %vm120 = vcmp.eq.s32.totalorder %v112, 15
    %v121 = vld [vmem:[#allocation2] sm:$0xff]
    %v122 = vld [vmem:[#allocation2 + $0x8] sm:$0xff]
    %v123 = vld [vmem:[#allocation2 + $0x10] sm:$0xff]
    %v124 = vld [vmem:[#allocation2 + $0x18] sm:$0xff]
    %v125 = vld [vmem:[%s3] sm:$0x1]
    %v126 = vld [vmem:[%s3 + $0x1] sm:$0x1]
    %v127 = vld [vmem:[%s3 + $0x2] sm:$0x1]
    %v128 = vld [vmem:[%s3 + $0x3] sm:$0x1]
    %v129 = vpack.c.bf16 %v122, %v121
    %v130 = vpack.c.bf16 %v124, %v123
    %v131 = vrot.slane %v121, 7
    %v132 = vrot.slane %v122, 7
    %v133 = vrot.slane %v123, 7
    %v134 = vrot.slane %v124, 7
    %vm135 = vcmp.lt.s32.totalorder %v61, 1
    %v136 = vsel %vm135, %v133, %v134
    %v137 = vsel %vm135, %v132, %v133
    %v138 = vsel %vm135, %v131, %v132
    %v139 = vsel %vm135, %v134, %v131
    %v140 = vsel %vm113, 0.0, %v139
    %v141 = vsel %vm114, 0.0, %v138
    %v142 = vsel %vm115, 0.0, %v137
    %v143 = vsel %vm116, 0.0, %v136
    %v144 = vpack.c.bf16 %v141, %v140
    %v145 = vpack.c.bf16 %v143, %v142
    %v146 = vrot.slane %v121, 1
    %v147 = vrot.slane %v122, 1
    %v148 = vrot.slane %v123, 1
    %v149 = vrot.slane %v124, 1
    %vm150 = vcmp.lt.s32.totalorder %v61, 7
    %v151 = vsel %vm150, %v148, %v149
    %v152 = vsel %vm150, %v147, %v148
    %v153 = vsel %vm150, %v146, %v147
    %v154 = vsel %vm150, %v149, %v146
    %v155 = vsel %vm117, 0.0, %v153
    %v156 = vsel %vm118, 0.0, %v152
    %v157 = vsel %vm119, 0.0, %v151
    %v158 = vsel %vm120, 0.0, %v154
    %v159 = vpack.c.bf16 %v156, %v155
    %v160 = vpack.c.bf16 %v158, %v157
    %v161 = vld [vmem:[#allocation5] sm:$0xf]
    %v162 = vld [vmem:[#allocation5 + $0x4] sm:$0xf]
    %v163 = vld [vmem:[#allocation5 + $0x8] sm:$0xf]
    %v164 = vld [vmem:[#allocation5 + $0xc] sm:$0xf]
    %v165 = vld [vmem:[#allocation5 + $0x10] sm:$0xf]
    %v166 = vld [vmem:[#allocation5 + $0x14] sm:$0xf]
    %v167 = vld [vmem:[#allocation5 + $0x18] sm:$0xf]
    %v168 = vld [vmem:[#allocation5 + $0x1c] sm:$0xf]
    %v169 = vld [vmem:[#allocation5 + $0x20] sm:$0xf]
    %v170 = vld [vmem:[#allocation5 + $0x24] sm:$0xf]
    %v171 = vld [vmem:[#allocation5 + $0x28] sm:$0xf]
    %v172 = vld [vmem:[#allocation5 + $0x2c] sm:$0xf]
    %v173 = vld [vmem:[#allocation5 + $0x30] sm:$0xf]
    %v174 = vld [vmem:[#allocation5 + $0x34] sm:$0xf]
    %v175 = vld [vmem:[#allocation5 + $0x38] sm:$0xf]
    %v176 = vld [vmem:[#allocation5 + $0x3c] sm:$0xf]
    %s177 = scalar_lea.vmem [#allocation5], 64
    %v178 = vld [vmem:[%s177] sm:$0xf]
    %v179 = vld [vmem:[%s177 + $0x4] sm:$0xf]
    %v180 = vld [vmem:[%s177 + $0x8] sm:$0xf]
    %v181 = vld [vmem:[%s177 + $0xc] sm:$0xf]
    %v182 = vld [vmem:[%s177 + $0x10] sm:$0xf]
    %v183 = vld [vmem:[%s177 + $0x14] sm:$0xf]
    %v184 = vld [vmem:[%s177 + $0x18] sm:$0xf]
    %v185 = vld [vmem:[%s177 + $0x1c] sm:$0xf]
    %v186 = vld [vmem:[%s177 + $0x20] sm:$0xf]
    %v187 = vld [vmem:[%s177 + $0x24] sm:$0xf]
    %v188 = vld [vmem:[%s177 + $0x28] sm:$0xf]
    %v189 = vld [vmem:[%s177 + $0x2c] sm:$0xf]
    %v190 = vld [vmem:[%s177 + $0x30] sm:$0xf]
    %v191 = vld [vmem:[%s177 + $0x34] sm:$0xf]
    %v192 = vld [vmem:[%s177 + $0x38] sm:$0xf]
    %v193 = vld [vmem:[%s177 + $0x3c] sm:$0xf]
    %v210 = vunpack.c.l.b16 %v178
    %v211 = vunpack.c.l.b16 %v179
    %v212 = vunpack.c.l.b16 %v180
    %v213 = vunpack.c.l.b16 %v181
    %v214 = vunpack.c.l.b16 %v182
    %v215 = vunpack.c.l.b16 %v183
    %v216 = vunpack.c.l.b16 %v184
    %v217 = vunpack.c.l.b16 %v185
    %v218 = vunpack.c.l.b16 %v186
    %v219 = vunpack.c.l.b16 %v187
    %v220 = vunpack.c.l.b16 %v188
    %v221 = vunpack.c.l.b16 %v189
    %v222 = vunpack.c.l.b16 %v190
    %v223 = vunpack.c.l.b16 %v191
    %v224 = vunpack.c.l.b16 %v192
    %v225 = vunpack.c.l.b16 %v193
    %v226 = vpack.c.b16 %v211, %v210
    %v227 = vpack.c.b16 %v213, %v212
    %v228 = vpack.c.b16 %v215, %v214
    %v229 = vpack.c.b16 %v217, %v216
    %v230 = vpack.c.b16 %v219, %v218
    %v231 = vpack.c.b16 %v221, %v220
    %v232 = vpack.c.b16 %v223, %v222
    %v233 = vpack.c.b16 %v225, %v224
    %242 = vmatprep.subr.bf16.mxu0 0
    %243 = vmatpush1.bf16.msra.mxu0 %v226
    %244 = vmatprep.subr.bf16.mxu0 0
    %245 = vmatpush1.bf16.msra.mxu0 %v227
    %246 = vmatprep.subr.bf16.mxu0 0
    %247 = vmatpush1.bf16.msra.mxu0 %v228
    %248 = vmatprep.subr.bf16.mxu0 0
    %249 = vmatpush1.bf16.msra.mxu0 %v229
    %250 = vmatprep.subr.bf16.mxu0 0
    %251 = vmatpush1.bf16.msra.mxu0 %v230
    %252 = vmatprep.subr.bf16.mxu0 0
    %253 = vmatpush1.bf16.msra.mxu0 %v231
    %254 = vmatprep.subr.bf16.mxu0 0
    %255 = vmatpush1.bf16.msra.mxu0 %v232
    %256 = vmatprep.subr.bf16.mxu0 0
    %257 = vmatpush1.bf16.msra.mxu0 %v233
    %258 = vmatprep.subr.bf16.mxu0 0
    %259 = vmatpush1.bf16.msra.mxu0 0
    %260 = vmatprep.subr.bf16.mxu0 0
    %261 = vmatpush1.bf16.msra.mxu0 0
    %262 = vmatprep.subr.bf16.mxu0 0
    %263 = vmatpush1.bf16.msra.mxu0 0
    %264 = vmatprep.subr.bf16.mxu0 0
    %265 = vmatpush1.bf16.msra.mxu0 0
    %266 = vmatprep.subr.bf16.mxu0 0
    %267 = vmatpush1.bf16.msra.mxu0 0
    %268 = vmatprep.subr.bf16.mxu0 0
    %269 = vmatpush1.bf16.msra.mxu0 0
    %270 = vmatprep.subr.bf16.mxu0 0
    %271 = vmatpush1.bf16.msra.mxu0 0
    %272 = vmatprep.subr.bf16.mxu0 0
    %273 = vmatpush1.bf16.msra.mxu0 0
    %274 = vmatprep.mubr.bf16.mxu0 0
    %275 = vmatmul.mubr.bf16.gmra.mrb[0].mxu0 %v129
    %v276 = vpop.f32.mrb[0].mxu0
    %v277 = vadd.f32 0.0, %v276
    %v278 = vpop.f32.mrb[0].mxu0
    %v279 = vpop.f32.mrb[0].mxu0
    %v280 = vadd.f32 0.0, %v279
    %v281 = vpop.f32.mrb[0].mxu0
    %282 = vmatprep.mubr.bf16.mxu0 0
    %283 = vmatmul.mubr.bf16.gmra.mrb[0].mxu0 %v130
    %v284 = vpop.f32.mrb[0].mxu0
    %v285 = vadd.f32 0.0, %v284
    %v286 = vpop.f32.mrb[0].mxu0
    %v287 = vpop.f32.mrb[0].mxu0
    %v288 = vadd.f32 0.0, %v287
    %v289 = vpop.f32.mrb[0].mxu0
    %290 = vdwg.mxu0
    %v307 = vunpack.c.l.b16 %v161
    %v308 = vunpack.c.l.b16 %v162
    %v309 = vunpack.c.l.b16 %v163
    %v310 = vunpack.c.l.b16 %v164
    %v311 = vunpack.c.l.b16 %v165
    %v312 = vunpack.c.l.b16 %v166
    %v313 = vunpack.c.l.b16 %v167
    %v314 = vunpack.c.l.b16 %v168
    %v315 = vunpack.c.l.b16 %v169
    %v316 = vunpack.c.l.b16 %v170
    %v317 = vunpack.c.l.b16 %v171
    %v318 = vunpack.c.l.b16 %v172
    %v319 = vunpack.c.l.b16 %v173
    %v320 = vunpack.c.l.b16 %v174
    %v321 = vunpack.c.l.b16 %v175
    %v322 = vunpack.c.l.b16 %v176
    %v323 = vpack.c.b16 %v308, %v307
    %v324 = vpack.c.b16 %v310, %v309
    %v325 = vpack.c.b16 %v312, %v311
    %v326 = vpack.c.b16 %v314, %v313
    %v327 = vpack.c.b16 %v316, %v315
    %v328 = vpack.c.b16 %v318, %v317
    %v329 = vpack.c.b16 %v320, %v319
    %v330 = vpack.c.b16 %v322, %v321
    %339 = vmatprep.subr.bf16.mxu0 0
    %340 = vmatpush1.bf16.msra.mxu0 %v323
    %341 = vmatprep.subr.bf16.mxu0 0
    %342 = vmatpush1.bf16.msra.mxu0 %v324
    %343 = vmatprep.subr.bf16.mxu0 0
    %344 = vmatpush1.bf16.msra.mxu0 %v325
    %345 = vmatprep.subr.bf16.mxu0 0
    %346 = vmatpush1.bf16.msra.mxu0 %v326
    %347 = vmatprep.subr.bf16.mxu0 0
    %348 = vmatpush1.bf16.msra.mxu0 %v327
    %349 = vmatprep.subr.bf16.mxu0 0
    %350 = vmatpush1.bf16.msra.mxu0 %v328
    %351 = vmatprep.subr.bf16.mxu0 0
    %352 = vmatpush1.bf16.msra.mxu0 %v329
    %353 = vmatprep.subr.bf16.mxu0 0
    %354 = vmatpush1.bf16.msra.mxu0 %v330
    %355 = vmatprep.subr.bf16.mxu0 0
    %356 = vmatpush1.bf16.msra.mxu0 0
    %357 = vmatprep.subr.bf16.mxu0 0
    %358 = vmatpush1.bf16.msra.mxu0 0
    %359 = vmatprep.subr.bf16.mxu0 0
    %360 = vmatpush1.bf16.msra.mxu0 0
    %361 = vmatprep.subr.bf16.mxu0 0
    %362 = vmatpush1.bf16.msra.mxu0 0
    %363 = vmatprep.subr.bf16.mxu0 0
    %364 = vmatpush1.bf16.msra.mxu0 0
    %365 = vmatprep.subr.bf16.mxu0 0
    %366 = vmatpush1.bf16.msra.mxu0 0
    %367 = vmatprep.subr.bf16.mxu0 0
    %368 = vmatpush1.bf16.msra.mxu0 0
    %369 = vmatprep.subr.bf16.mxu0 0
    %370 = vmatpush1.bf16.msra.mxu0 0
    %371 = vmatprep.mubr.bf16.mxu0 0
    %372 = vmatmul.mubr.bf16.gmra.mrb[0].mxu0 %v144
    %v373 = vpop.f32.mrb[0].mxu0
    %v374 = vadd.f32 %v277, %v373
    %v375 = vpop.f32.mrb[0].mxu0
    %v376 = vpop.f32.mrb[0].mxu0
    %v377 = vadd.f32 %v280, %v376
    %v378 = vpop.f32.mrb[0].mxu0
    %379 = vmatprep.mubr.bf16.mxu0 0
    %380 = vmatmul.mubr.bf16.gmra.mrb[0].mxu0 %v145
    %v381 = vpop.f32.mrb[0].mxu0
    %v382 = vadd.f32 %v285, %v381
    %v383 = vpop.f32.mrb[0].mxu0
    %v384 = vpop.f32.mrb[0].mxu0
    %v385 = vadd.f32 %v288, %v384
    %v386 = vpop.f32.mrb[0].mxu0
    %387 = vdwg.mxu0
    %s388 = scalar_lea.vmem [#allocation5], 128
    %v389 = vld [vmem:[%s388] sm:$0xf]
    %v390 = vld [vmem:[%s388 + $0x4] sm:$0xf]
    %v391 = vld [vmem:[%s388 + $0x8] sm:$0xf]
    %v392 = vld [vmem:[%s388 + $0xc] sm:$0xf]
    %v393 = vld [vmem:[%s388 + $0x10] sm:$0xf]
    %v394 = vld [vmem:[%s388 + $0x14] sm:$0xf]
    %v395 = vld [vmem:[%s388 + $0x18] sm:$0xf]
    %v396 = vld [vmem:[%s388 + $0x1c] sm:$0xf]
    %v397 = vld [vmem:[%s388 + $0x20] sm:$0xf]
    %v398 = vld [vmem:[%s388 + $0x24] sm:$0xf]
    %v399 = vld [vmem:[%s388 + $0x28] sm:$0xf]
    %v400 = vld [vmem:[%s388 + $0x2c] sm:$0xf]
    %v401 = vld [vmem:[%s388 + $0x30] sm:$0xf]
    %v402 = vld [vmem:[%s388 + $0x34] sm:$0xf]
    %v403 = vld [vmem:[%s388 + $0x38] sm:$0xf]
    %v404 = vld [vmem:[%s388 + $0x3c] sm:$0xf]
    %v421 = vunpack.c.l.b16 %v389
    %v422 = vunpack.c.l.b16 %v390
    %v423 = vunpack.c.l.b16 %v391
    %v424 = vunpack.c.l.b16 %v392
    %v425 = vunpack.c.l.b16 %v393
    %v426 = vunpack.c.l.b16 %v394
    %v427 = vunpack.c.l.b16 %v395
    %v428 = vunpack.c.l.b16 %v396
    %v429 = vunpack.c.l.b16 %v397
    %v430 = vunpack.c.l.b16 %v398
    %v431 = vunpack.c.l.b16 %v399
    %v432 = vunpack.c.l.b16 %v400
    %v433 = vunpack.c.l.b16 %v401
    %v434 = vunpack.c.l.b16 %v402
    %v435 = vunpack.c.l.b16 %v403
    %v436 = vunpack.c.l.b16 %v404
    %v437 = vpack.c.b16 %v422, %v421
    %v438 = vpack.c.b16 %v424, %v423
    %v439 = vpack.c.b16 %v426, %v425
    %v440 = vpack.c.b16 %v428, %v427
    %v441 = vpack.c.b16 %v430, %v429
    %v442 = vpack.c.b16 %v432, %v431
    %v443 = vpack.c.b16 %v434, %v433
    %v444 = vpack.c.b16 %v436, %v435
    %453 = vmatprep.subr.bf16.mxu0 0
    %454 = vmatpush1.bf16.msra.mxu0 %v437
    %455 = vmatprep.subr.bf16.mxu0 0
    %456 = vmatpush1.bf16.msra.mxu0 %v438
    %457 = vmatprep.subr.bf16.mxu0 0
    %458 = vmatpush1.bf16.msra.mxu0 %v439
    %459 = vmatprep.subr.bf16.mxu0 0
    %460 = vmatpush1.bf16.msra.mxu0 %v440
    %461 = vmatprep.subr.bf16.mxu0 0
    %462 = vmatpush1.bf16.msra.mxu0 %v441
    %463 = vmatprep.subr.bf16.mxu0 0
    %464 = vmatpush1.bf16.msra.mxu0 %v442
    %465 = vmatprep.subr.bf16.mxu0 0
    %466 = vmatpush1.bf16.msra.mxu0 %v443
    %467 = vmatprep.subr.bf16.mxu0 0
    %468 = vmatpush1.bf16.msra.mxu0 %v444
    %469 = vmatprep.subr.bf16.mxu0 0
    %470 = vmatpush1.bf16.msra.mxu0 0
    %471 = vmatprep.subr.bf16.mxu0 0
    %472 = vmatpush1.bf16.msra.mxu0 0
    %473 = vmatprep.subr.bf16.mxu0 0
    %474 = vmatpush1.bf16.msra.mxu0 0
    %475 = vmatprep.subr.bf16.mxu0 0
    %476 = vmatpush1.bf16.msra.mxu0 0
    %477 = vmatprep.subr.bf16.mxu0 0
    %478 = vmatpush1.bf16.msra.mxu0 0
    %479 = vmatprep.subr.bf16.mxu0 0
    %480 = vmatpush1.bf16.msra.mxu0 0
    %481 = vmatprep.subr.bf16.mxu0 0
    %482 = vmatpush1.bf16.msra.mxu0 0
    %483 = vmatprep.subr.bf16.mxu0 0
    %484 = vmatpush1.bf16.msra.mxu0 0
    %485 = vmatprep.mubr.bf16.mxu0 0
    %486 = vmatmul.mubr.bf16.gmra.mrb[0].mxu0 %v159
    %v487 = vpop.f32.mrb[0].mxu0
    %v488 = vadd.f32 0.0, %v487
    %v489 = vpop.f32.mrb[0].mxu0
    %v490 = vpop.f32.mrb[0].mxu0
    %v491 = vadd.f32 0.0, %v490
    %v492 = vpop.f32.mrb[0].mxu0
    %493 = vmatprep.mubr.bf16.mxu0 0
    %494 = vmatmul.mubr.bf16.gmra.mrb[0].mxu0 %v160
    %v495 = vpop.f32.mrb[0].mxu0
    %v496 = vadd.f32 0.0, %v495
    %v497 = vpop.f32.mrb[0].mxu0
    %v498 = vpop.f32.mrb[0].mxu0
    %v499 = vadd.f32 0.0, %v498
    %v500 = vpop.f32.mrb[0].mxu0
    %501 = vdwg.mxu0
    %v502 = vadd.f32 %v374, %v488
    %v503 = vadd.f32 %v377, %v491
    %v504 = vadd.f32 %v382, %v496
    %v505 = vadd.f32 %v385, %v499
    %v506 = vadd.f32 %v502, %v503
    %v507 = vadd.f32 %v506, %v504
    %v508 = vadd.f32 %v507, %v505
    %v509 = vrot.slane %v508, 4
    %v510 = vadd.f32 %v508, %v509
    %v511 = vrot.slane %v510, 2
    %v512 = vadd.f32 %v510, %v511
    %v513 = vrot.slane %v512, 1
    %v514 = vadd.f32 %v512, %v513
    %515 = vrot.lane.b32.xlu0 %v514, 8
    %v516 = vpop.permute.xlu0 %515
    %v517 = vadd.f32 %v514, %v516
    %518 = vrot.lane.b32.xlu0 %v517, 16
    %v519 = vpop.permute.xlu0 %518
    %v520 = vadd.f32 %v517, %v519
    %521 = vrot.lane.b32.xlu0 %v520, 32
    %v522 = vpop.permute.xlu0 %521
    %v523 = vadd.f32 %v520, %v522
    %524 = vrot.lane.b32.xlu0 %v523, 64
    %v525 = vpop.permute.xlu0 %524
    %v526 = vadd.f32 %v523, %v525
    %v527 = vmul.f32 %v526, 0.001953125
    %v528 = vmul.f32 %v502, %v502
    %v529 = vmul.f32 %v503, %v503
    %v530 = vmul.f32 %v504, %v504
    %v531 = vmul.f32 %v505, %v505
    %v532 = vadd.f32 %v528, %v529
    %v533 = vadd.f32 %v532, %v530
    %v534 = vadd.f32 %v533, %v531
    %v535 = vrot.slane %v534, 4
    %v536 = vadd.f32 %v534, %v535
    %v537 = vrot.slane %v536, 2
    %v538 = vadd.f32 %v536, %v537
    %v539 = vrot.slane %v538, 1
    %v540 = vadd.f32 %v538, %v539
    %541 = vrot.lane.b32.xlu0 %v540, 8
    %v542 = vpop.permute.xlu0 %541
    %v543 = vadd.f32 %v540, %v542
    %544 = vrot.lane.b32.xlu0 %v543, 16
    %v545 = vpop.permute.xlu0 %544
    %v546 = vadd.f32 %v543, %v545
    %547 = vrot.lane.b32.xlu0 %v546, 32
    %v548 = vpop.permute.xlu0 %547
    %v549 = vadd.f32 %v546, %v548
    %550 = vrot.lane.b32.xlu0 %v549, 64
    %v551 = vpop.permute.xlu0 %550
    %v552 = vadd.f32 %v549, %v551
    %v553 = vmul.f32 %v552, 0.001953125
    %v554 = vmul.f32 %v527, %v527
    %v555 = vsub.f32 %v553, %v554
    %v556 = vadd.f32 %v555, 1e-05
    %v557 = vrsqrt.pop %v556
    %v558 = vmul.f32 %v125, %v557
    %v559 = vmul.f32 %v527, %v558
    %v560 = vsub.f32 %v126, %v559
    %v561 = vlaneseq
    %v562 = vshrl.u32 %v561, 7
    %v563 = vsub.s32 0, %v562
    %v564 = vrot.slane %v558, %v563
    %v565 = vmul.f32 %v502, %v564
    %v566 = vmul.f32 %v503, %v564
    %v567 = vmul.f32 %v504, %v564
    %v568 = vmul.f32 %v505, %v564
    %v569 = vlaneseq
    %v570 = vshrl.u32 %v569, 7
    %v571 = vsub.s32 0, %v570
    %v572 = vrot.slane %v560, %v571
    %v573 = vadd.f32 %v565, %v572
    %v574 = vadd.f32 %v566, %v572
    %v575 = vadd.f32 %v567, %v572
    %v576 = vadd.f32 %v568, %v572
    %v577 = vmax.f32 %v573, 0.0
    %v578 = vmax.f32 %v574, 0.0
    %v579 = vmax.f32 %v575, 0.0
    %v580 = vmax.f32 %v576, 0.0
    %v581 = vpack.c.bf16 %v578, %v577
    %v582 = vpack.c.bf16 %v580, %v579
    %v583 = vrot.slane %v577, 7
    %v584 = vrot.slane %v578, 7
    %v585 = vrot.slane %v579, 7
    %v586 = vrot.slane %v580, 7
    %v587 = vsel %vm135, %v585, %v586
    %v588 = vsel %vm135, %v584, %v585
    %v589 = vsel %vm135, %v583, %v584
    %v590 = vsel %vm135, %v586, %v583
    %v591 = vsel %vm113, 0.0, %v590
    %v592 = vsel %vm114, 0.0, %v589
    %v593 = vsel %vm115, 0.0, %v588
    %v594 = vsel %vm116, 0.0, %v587
    %v595 = vpack.c.bf16 %v592, %v591
    %v596 = vpack.c.bf16 %v594, %v593
    %v597 = vrot.slane %v577, 1
    %v598 = vrot.slane %v578, 1
    %v599 = vrot.slane %v579, 1
    %v600 = vrot.slane %v580, 1
    %v601 = vsel %vm150, %v599, %v600
    %v602 = vsel %vm150, %v598, %v599
    %v603 = vsel %vm150, %v597, %v598
    %v604 = vsel %vm150, %v600, %v597
    %v605 = vsel %vm117, 0.0, %v603
    %v606 = vsel %vm118, 0.0, %v602
    %v607 = vsel %vm119, 0.0, %v601
    %v608 = vsel %vm120, 0.0, %v604
    %v609 = vpack.c.bf16 %v606, %v605
    %v610 = vpack.c.bf16 %v608, %v607
    %v611 = vld [vmem:[#allocation7] sm:$0xf]
    %v612 = vld [vmem:[#allocation7 + $0x4] sm:$0xf]
    %v613 = vld [vmem:[#allocation7 + $0x8] sm:$0xf]
    %v614 = vld [vmem:[#allocation7 + $0xc] sm:$0xf]
    %v615 = vld [vmem:[#allocation7 + $0x10] sm:$0xf]
    %v616 = vld [vmem:[#allocation7 + $0x14] sm:$0xf]
    %v617 = vld [vmem:[#allocation7 + $0x18] sm:$0xf]
    %v618 = vld [vmem:[#allocation7 + $0x1c] sm:$0xf]
    %v619 = vld [vmem:[#allocation7 + $0x20] sm:$0xf]
    %v620 = vld [vmem:[#allocation7 + $0x24] sm:$0xf]
    %v621 = vld [vmem:[#allocation7 + $0x28] sm:$0xf]
    %v622 = vld [vmem:[#allocation7 + $0x2c] sm:$0xf]
    %v623 = vld [vmem:[#allocation7 + $0x30] sm:$0xf]
    %v624 = vld [vmem:[#allocation7 + $0x34] sm:$0xf]
    %v625 = vld [vmem:[#allocation7 + $0x38] sm:$0xf]
    %v626 = vld [vmem:[#allocation7 + $0x3c] sm:$0xf]
    %s627 = scalar_lea.vmem [#allocation7], 64
    %v628 = vld [vmem:[%s627] sm:$0xf]
    %v629 = vld [vmem:[%s627 + $0x4] sm:$0xf]
    %v630 = vld [vmem:[%s627 + $0x8] sm:$0xf]
    %v631 = vld [vmem:[%s627 + $0xc] sm:$0xf]
    %v632 = vld [vmem:[%s627 + $0x10] sm:$0xf]
    %v633 = vld [vmem:[%s627 + $0x14] sm:$0xf]
    %v634 = vld [vmem:[%s627 + $0x18] sm:$0xf]
    %v635 = vld [vmem:[%s627 + $0x1c] sm:$0xf]
    %v636 = vld [vmem:[%s627 + $0x20] sm:$0xf]
    %v637 = vld [vmem:[%s627 + $0x24] sm:$0xf]
    %v638 = vld [vmem:[%s627 + $0x28] sm:$0xf]
    %v639 = vld [vmem:[%s627 + $0x2c] sm:$0xf]
    %v640 = vld [vmem:[%s627 + $0x30] sm:$0xf]
    %v641 = vld [vmem:[%s627 + $0x34] sm:$0xf]
    %v642 = vld [vmem:[%s627 + $0x38] sm:$0xf]
    %v643 = vld [vmem:[%s627 + $0x3c] sm:$0xf]
    %v660 = vunpack.c.l.b16 %v628
    %v661 = vunpack.c.l.b16 %v629
    %v662 = vunpack.c.l.b16 %v630
    %v663 = vunpack.c.l.b16 %v631
    %v664 = vunpack.c.l.b16 %v632
    %v665 = vunpack.c.l.b16 %v633
    %v666 = vunpack.c.l.b16 %v634
    %v667 = vunpack.c.l.b16 %v635
    %v668 = vunpack.c.l.b16 %v636
    %v669 = vunpack.c.l.b16 %v637
    %v670 = vunpack.c.l.b16 %v638
    %v671 = vunpack.c.l.b16 %v639
    %v672 = vunpack.c.l.b16 %v640
    %v673 = vunpack.c.l.b16 %v641
    %v674 = vunpack.c.l.b16 %v642
    %v675 = vunpack.c.l.b16 %v643
    %v676 = vpack.c.b16 %v661, %v660
    %v677 = vpack.c.b16 %v663, %v662
    %v678 = vpack.c.b16 %v665, %v664
    %v679 = vpack.c.b16 %v667, %v666
    %v680 = vpack.c.b16 %v669, %v668
    %v681 = vpack.c.b16 %v671, %v670
    %v682 = vpack.c.b16 %v673, %v672
    %v683 = vpack.c.b16 %v675, %v674
    %692 = vmatprep.subr.bf16.mxu0 0
    %693 = vmatpush1.bf16.msra.mxu0 %v676
    %694 = vmatprep.subr.bf16.mxu0 0
    %695 = vmatpush1.bf16.msra.mxu0 %v677
    %696 = vmatprep.subr.bf16.mxu0 0
    %697 = vmatpush1.bf16.msra.mxu0 %v678
    %698 = vmatprep.subr.bf16.mxu0 0
    %699 = vmatpush1.bf16.msra.mxu0 %v679
    %700 = vmatprep.subr.bf16.mxu0 0
    %701 = vmatpush1.bf16.msra.mxu0 %v680
    %702 = vmatprep.subr.bf16.mxu0 0
    %703 = vmatpush1.bf16.msra.mxu0 %v681
    %704 = vmatprep.subr.bf16.mxu0 0
    %705 = vmatpush1.bf16.msra.mxu0 %v682
    %706 = vmatprep.subr.bf16.mxu0 0
    %707 = vmatpush1.bf16.msra.mxu0 %v683
    %708 = vmatprep.subr.bf16.mxu0 0
    %709 = vmatpush1.bf16.msra.mxu0 0
    %710 = vmatprep.subr.bf16.mxu0 0
    %711 = vmatpush1.bf16.msra.mxu0 0
    %712 = vmatprep.subr.bf16.mxu0 0
    %713 = vmatpush1.bf16.msra.mxu0 0
    %714 = vmatprep.subr.bf16.mxu0 0
    %715 = vmatpush1.bf16.msra.mxu0 0
    %716 = vmatprep.subr.bf16.mxu0 0
    %717 = vmatpush1.bf16.msra.mxu0 0
    %718 = vmatprep.subr.bf16.mxu0 0
    %719 = vmatpush1.bf16.msra.mxu0 0
    %720 = vmatprep.subr.bf16.mxu0 0
    %721 = vmatpush1.bf16.msra.mxu0 0
    %722 = vmatprep.subr.bf16.mxu0 0
    %723 = vmatpush1.bf16.msra.mxu0 0
    %724 = vmatprep.mubr.bf16.mxu0 0
    %725 = vmatmul.mubr.bf16.gmra.mrb[0].mxu0 %v581
    %v726 = vpop.f32.mrb[0].mxu0
    %v727 = vadd.f32 0.0, %v726
    %v728 = vpop.f32.mrb[0].mxu0
    %v729 = vpop.f32.mrb[0].mxu0
    %v730 = vadd.f32 0.0, %v729
    %v731 = vpop.f32.mrb[0].mxu0
    %732 = vmatprep.mubr.bf16.mxu0 0
    %733 = vmatmul.mubr.bf16.gmra.mrb[0].mxu0 %v582
    %v734 = vpop.f32.mrb[0].mxu0
    %v735 = vadd.f32 0.0, %v734
    %v736 = vpop.f32.mrb[0].mxu0
    %v737 = vpop.f32.mrb[0].mxu0
    %v738 = vadd.f32 0.0, %v737
    %v739 = vpop.f32.mrb[0].mxu0
    %740 = vdwg.mxu0
    %v757 = vunpack.c.l.b16 %v611
    %v758 = vunpack.c.l.b16 %v612
    %v759 = vunpack.c.l.b16 %v613
    %v760 = vunpack.c.l.b16 %v614
    %v761 = vunpack.c.l.b16 %v615
    %v762 = vunpack.c.l.b16 %v616
    %v763 = vunpack.c.l.b16 %v617
    %v764 = vunpack.c.l.b16 %v618
    %v765 = vunpack.c.l.b16 %v619
    %v766 = vunpack.c.l.b16 %v620
    %v767 = vunpack.c.l.b16 %v621
    %v768 = vunpack.c.l.b16 %v622
    %v769 = vunpack.c.l.b16 %v623
    %v770 = vunpack.c.l.b16 %v624
    %v771 = vunpack.c.l.b16 %v625
    %v772 = vunpack.c.l.b16 %v626
    %v773 = vpack.c.b16 %v758, %v757
    %v774 = vpack.c.b16 %v760, %v759
    %v775 = vpack.c.b16 %v762, %v761
    %v776 = vpack.c.b16 %v764, %v763
    %v777 = vpack.c.b16 %v766, %v765
    %v778 = vpack.c.b16 %v768, %v767
    %v779 = vpack.c.b16 %v770, %v769
    %v780 = vpack.c.b16 %v772, %v771
    %789 = vmatprep.subr.bf16.mxu0 0
    %790 = vmatpush1.bf16.msra.mxu0 %v773
    %791 = vmatprep.subr.bf16.mxu0 0
    %792 = vmatpush1.bf16.msra.mxu0 %v774
    %793 = vmatprep.subr.bf16.mxu0 0
    %794 = vmatpush1.bf16.msra.mxu0 %v775
    %795 = vmatprep.subr.bf16.mxu0 0
    %796 = vmatpush1.bf16.msra.mxu0 %v776
    %797 = vmatprep.subr.bf16.mxu0 0
    %798 = vmatpush1.bf16.msra.mxu0 %v777
    %799 = vmatprep.subr.bf16.mxu0 0
    %800 = vmatpush1.bf16.msra.mxu0 %v778
    %801 = vmatprep.subr.bf16.mxu0 0
    %802 = vmatpush1.bf16.msra.mxu0 %v779
    %803 = vmatprep.subr.bf16.mxu0 0
    %804 = vmatpush1.bf16.msra.mxu0 %v780
    %805 = vmatprep.subr.bf16.mxu0 0
    %806 = vmatpush1.bf16.msra.mxu0 0
    %807 = vmatprep.subr.bf16.mxu0 0
    %808 = vmatpush1.bf16.msra.mxu0 0
    %809 = vmatprep.subr.bf16.mxu0 0
    %810 = vmatpush1.bf16.msra.mxu0 0
    %811 = vmatprep.subr.bf16.mxu0 0
    %812 = vmatpush1.bf16.msra.mxu0 0
    %813 = vmatprep.subr.bf16.mxu0 0
    %814 = vmatpush1.bf16.msra.mxu0 0
    %815 = vmatprep.subr.bf16.mxu0 0
    %816 = vmatpush1.bf16.msra.mxu0 0
    %817 = vmatprep.subr.bf16.mxu0 0
    %818 = vmatpush1.bf16.msra.mxu0 0
    %819 = vmatprep.subr.bf16.mxu0 0
    %820 = vmatpush1.bf16.msra.mxu0 0
    %821 = vmatprep.mubr.bf16.mxu0 0
    %822 = vmatmul.mubr.bf16.gmra.mrb[0].mxu0 %v595
    %v823 = vpop.f32.mrb[0].mxu0
    %v824 = vadd.f32 %v727, %v823
    %v825 = vpop.f32.mrb[0].mxu0
    %v826 = vpop.f32.mrb[0].mxu0
    %v827 = vadd.f32 %v730, %v826
    %v828 = vpop.f32.mrb[0].mxu0
    %829 = vmatprep.mubr.bf16.mxu0 0
    %830 = vmatmul.mubr.bf16.gmra.mrb[0].mxu0 %v596
    %v831 = vpop.f32.mrb[0].mxu0
    %v832 = vadd.f32 %v735, %v831
    %v833 = vpop.f32.mrb[0].mxu0
    %v834 = vpop.f32.mrb[0].mxu0
    %v835 = vadd.f32 %v738, %v834
    %v836 = vpop.f32.mrb[0].mxu0
    %837 = vdwg.mxu0
    %s838 = scalar_lea.vmem [#allocation7], 128
    %v839 = vld [vmem:[%s838] sm:$0xf]
    %v840 = vld [vmem:[%s838 + $0x4] sm:$0xf]
    %v841 = vld [vmem:[%s838 + $0x8] sm:$0xf]
    %v842 = vld [vmem:[%s838 + $0xc] sm:$0xf]
    %v843 = vld [vmem:[%s838 + $0x10] sm:$0xf]
    %v844 = vld [vmem:[%s838 + $0x14] sm:$0xf]
    %v845 = vld [vmem:[%s838 + $0x18] sm:$0xf]
    %v846 = vld [vmem:[%s838 + $0x1c] sm:$0xf]
    %v847 = vld [vmem:[%s838 + $0x20] sm:$0xf]
    %v848 = vld [vmem:[%s838 + $0x24] sm:$0xf]
    %v849 = vld [vmem:[%s838 + $0x28] sm:$0xf]
    %v850 = vld [vmem:[%s838 + $0x2c] sm:$0xf]
    %v851 = vld [vmem:[%s838 + $0x30] sm:$0xf]
    %v852 = vld [vmem:[%s838 + $0x34] sm:$0xf]
    %v853 = vld [vmem:[%s838 + $0x38] sm:$0xf]
    %v854 = vld [vmem:[%s838 + $0x3c] sm:$0xf]
    %v871 = vunpack.c.l.b16 %v839
    %v872 = vunpack.c.l.b16 %v840
    %v873 = vunpack.c.l.b16 %v841
    %v874 = vunpack.c.l.b16 %v842
    %v875 = vunpack.c.l.b16 %v843
    %v876 = vunpack.c.l.b16 %v844
    %v877 = vunpack.c.l.b16 %v845
    %v878 = vunpack.c.l.b16 %v846
    %v879 = vunpack.c.l.b16 %v847
    %v880 = vunpack.c.l.b16 %v848
    %v881 = vunpack.c.l.b16 %v849
    %v882 = vunpack.c.l.b16 %v850
    %v883 = vunpack.c.l.b16 %v851
    %v884 = vunpack.c.l.b16 %v852
    %v885 = vunpack.c.l.b16 %v853
    %v886 = vunpack.c.l.b16 %v854
    %v887 = vpack.c.b16 %v872, %v871
    %v888 = vpack.c.b16 %v874, %v873
    %v889 = vpack.c.b16 %v876, %v875
    %v890 = vpack.c.b16 %v878, %v877
    %v891 = vpack.c.b16 %v880, %v879
    %v892 = vpack.c.b16 %v882, %v881
    %v893 = vpack.c.b16 %v884, %v883
    %v894 = vpack.c.b16 %v886, %v885
    %903 = vmatprep.subr.bf16.mxu0 0
    %904 = vmatpush1.bf16.msra.mxu0 %v887
    %905 = vmatprep.subr.bf16.mxu0 0
    %906 = vmatpush1.bf16.msra.mxu0 %v888
    %907 = vmatprep.subr.bf16.mxu0 0
    %908 = vmatpush1.bf16.msra.mxu0 %v889
    %909 = vmatprep.subr.bf16.mxu0 0
    %910 = vmatpush1.bf16.msra.mxu0 %v890
    %911 = vmatprep.subr.bf16.mxu0 0
    %912 = vmatpush1.bf16.msra.mxu0 %v891
    %913 = vmatprep.subr.bf16.mxu0 0
    %914 = vmatpush1.bf16.msra.mxu0 %v892
    %915 = vmatprep.subr.bf16.mxu0 0
    %916 = vmatpush1.bf16.msra.mxu0 %v893
    %917 = vmatprep.subr.bf16.mxu0 0
    %918 = vmatpush1.bf16.msra.mxu0 %v894
    %919 = vmatprep.subr.bf16.mxu0 0
    %920 = vmatpush1.bf16.msra.mxu0 0
    %921 = vmatprep.subr.bf16.mxu0 0
    %922 = vmatpush1.bf16.msra.mxu0 0
    %923 = vmatprep.subr.bf16.mxu0 0
    %924 = vmatpush1.bf16.msra.mxu0 0
    %925 = vmatprep.subr.bf16.mxu0 0
    %926 = vmatpush1.bf16.msra.mxu0 0
    %927 = vmatprep.subr.bf16.mxu0 0
    %928 = vmatpush1.bf16.msra.mxu0 0
    %929 = vmatprep.subr.bf16.mxu0 0
    %930 = vmatpush1.bf16.msra.mxu0 0
    %931 = vmatprep.subr.bf16.mxu0 0
    %932 = vmatpush1.bf16.msra.mxu0 0
    %933 = vmatprep.subr.bf16.mxu0 0
    %934 = vmatpush1.bf16.msra.mxu0 0
    %935 = vmatprep.mubr.bf16.mxu0 0
    %936 = vmatmul.mubr.bf16.gmra.mrb[0].mxu0 %v609
    %v937 = vpop.f32.mrb[0].mxu0
    %v938 = vadd.f32 0.0, %v937
    %v939 = vpop.f32.mrb[0].mxu0
    %v940 = vpop.f32.mrb[0].mxu0
    %v941 = vadd.f32 0.0, %v940
    %v942 = vpop.f32.mrb[0].mxu0
    %943 = vmatprep.mubr.bf16.mxu0 0
    %944 = vmatmul.mubr.bf16.gmra.mrb[0].mxu0 %v610
    %v945 = vpop.f32.mrb[0].mxu0
    %v946 = vadd.f32 0.0, %v945
    %v947 = vpop.f32.mrb[0].mxu0
    %v948 = vpop.f32.mrb[0].mxu0
    %v949 = vadd.f32 0.0, %v948
    %v950 = vpop.f32.mrb[0].mxu0
    %951 = vdwg.mxu0
    %v952 = vadd.f32 %v824, %v938
    %v953 = vadd.f32 %v827, %v941
    %v954 = vadd.f32 %v832, %v946
    %v955 = vadd.f32 %v835, %v949
    %v956 = vadd.f32 %v952, %v953
    %v957 = vadd.f32 %v956, %v954
    %v958 = vadd.f32 %v957, %v955
    %v959 = vrot.slane %v958, 4
    %v960 = vadd.f32 %v958, %v959
    %v961 = vrot.slane %v960, 2
    %v962 = vadd.f32 %v960, %v961
    %v963 = vrot.slane %v962, 1
    %v964 = vadd.f32 %v962, %v963
    %965 = vrot.lane.b32.xlu0 %v964, 8
    %v966 = vpop.permute.xlu0 %965
    %v967 = vadd.f32 %v964, %v966
    %968 = vrot.lane.b32.xlu0 %v967, 16
    %v969 = vpop.permute.xlu0 %968
    %v970 = vadd.f32 %v967, %v969
    %971 = vrot.lane.b32.xlu0 %v970, 32
    %v972 = vpop.permute.xlu0 %971
    %v973 = vadd.f32 %v970, %v972
    %974 = vrot.lane.b32.xlu0 %v973, 64
    %v975 = vpop.permute.xlu0 %974
    %v976 = vadd.f32 %v973, %v975
    %v977 = vmul.f32 %v976, 0.001953125
    %v978 = vmul.f32 %v952, %v952
    %v979 = vmul.f32 %v953, %v953
    %v980 = vmul.f32 %v954, %v954
    %v981 = vmul.f32 %v955, %v955
    %v982 = vadd.f32 %v978, %v979
    %v983 = vadd.f32 %v982, %v980
    %v984 = vadd.f32 %v983, %v981
    %v985 = vrot.slane %v984, 4
    %v986 = vadd.f32 %v984, %v985
    %v987 = vrot.slane %v986, 2
    %v988 = vadd.f32 %v986, %v987
    %v989 = vrot.slane %v988, 1
    %v990 = vadd.f32 %v988, %v989
    %991 = vrot.lane.b32.xlu0 %v990, 8
    %v992 = vpop.permute.xlu0 %991
    %v993 = vadd.f32 %v990, %v992
    %994 = vrot.lane.b32.xlu0 %v993, 16
    %v995 = vpop.permute.xlu0 %994
    %v996 = vadd.f32 %v993, %v995
    %997 = vrot.lane.b32.xlu0 %v996, 32
    %v998 = vpop.permute.xlu0 %997
    %v999 = vadd.f32 %v996, %v998
    %1000 = vrot.lane.b32.xlu0 %v999, 64
    %v1001 = vpop.permute.xlu0 %1000
    %v1002 = vadd.f32 %v999, %v1001
    %v1003 = vmul.f32 %v1002, 0.001953125
    %v1004 = vmul.f32 %v977, %v977
    %v1005 = vsub.f32 %v1003, %v1004
    %v1006 = vadd.f32 %v1005, 1e-05
    %v1007 = vrsqrt.pop %v1006
    %v1008 = vmul.f32 %v127, %v1007
    %v1009 = vmul.f32 %v977, %v1008
    %v1010 = vsub.f32 %v128, %v1009
    %v1011 = vlaneseq
    %v1012 = vshrl.u32 %v1011, 7
    %v1013 = vsub.s32 0, %v1012
    %v1014 = vrot.slane %v1008, %v1013
    %v1015 = vmul.f32 %v952, %v1014
    %v1016 = vmul.f32 %v953, %v1014
    %v1017 = vmul.f32 %v954, %v1014
    %v1018 = vmul.f32 %v955, %v1014
    %v1019 = vlaneseq
    %v1020 = vshrl.u32 %v1019, 7
    %v1021 = vsub.s32 0, %v1020
    %v1022 = vrot.slane %v1010, %v1021
    %v1023 = vadd.f32 %v1015, %v1022
    %v1024 = vadd.f32 %v1016, %v1022
    %v1025 = vadd.f32 %v1017, %v1022
    %v1026 = vadd.f32 %v1018, %v1022
    %v1027 = vadd.f32 %v1023, %v121
    %v1028 = vadd.f32 %v1024, %v122
    %v1029 = vadd.f32 %v1025, %v123
    %v1030 = vadd.f32 %v1026, %v124
    %v1031 = vmax.f32 %v1027, 0.0
    %v1032 = vmax.f32 %v1028, 0.0
    %v1033 = vmax.f32 %v1029, 0.0
    %v1034 = vmax.f32 %v1030, 0.0
    %1035 = vst [vmem:[#allocation8] sm:$0xff] %v1031
    %1036 = vst [vmem:[#allocation8 + $0x8] sm:$0xff] %v1032
    %1037 = vst [vmem:[#allocation8 + $0x10] sm:$0xff] %v1033
    %1038 = vst [vmem:[#allocation8 + $0x18] sm:$0xff] %v1034
    // Predicated region
    $region30: #{tpu_custom_call.1} parent=1 // pred_check
      _
    $region31: #{tpu_custom_call.1} parent=1 // pred_check_branch
      %1040 = sbr.rel (0) target = $region33
    $region32: #{tpu_custom_call.1} parent=1 // pred_region
      %s1042 = ssub.s32 512, 512
      %1043 = vsyncadd [#allocation4], %s1042
      %s1044 = sshll.u32 [#allocation8], 4
      %s1045 = int_to_ptr.vmem [resolvable:$true] %s1044
      %1050 = dma.vmem_to_hbm [thread:$0]  %s1045, 512, %s4, [#allocation4], 128, 128, 8
    $region33: #{tpu_custom_call.1} parent=1 // pred_fallthru
      _
    // Predicated region
    $region34: #{tpu_custom_call.1} parent=1 // pred_check
      _
    $region35: #{tpu_custom_call.1} parent=1 // pred_check_branch
      %1052 = sbr.rel (0) target = $region37
    $region36: #{tpu_custom_call.1} parent=1 // pred_region
      %1053 = dma.done [#allocation4], 512
    $region37: #{tpu_custom_call.1} parent=1 // pred_fallthru
      _
    %1054 = vsyncpa [#allocation3], 1
    %1055 = vsyncpa [#allocation6], 1
    %1056 = vsyncpa [#allocation4], 1

</llo_original>
